<compile_context>
chip_gen: v5e
topology: v5e:2x2
jax: 0.10.0
libtpu: 0.0.40
codegen_flags: <defaults>
</compile_context>

<pallas_src>
import math
import numpy as np
import jax
import jax.numpy as jnp
from jax import lax
from jax.experimental import pallas as pl
from jax.experimental.pallas import tpu as pltpu

V = 25        # number of joints (hard-coded in the module: Feature_Mask / 25*C)
EPS = 1e-5    # PyTorch BatchNorm default eps


def _shift_indices(channels, sign):
    """Index arrays built exactly like the module's __init__ (sign=+1: shift_in,
    sign=-1: shift_out).  Used only by the pure-JAX reference."""
    idx = np.empty(V * channels, dtype=np.int32)
    for i in range(V):
        for j in range(channels):
            idx[i * channels + j] = (i * channels + j + sign * j * channels) % (channels * V)
    return jnp.asarray(idx)


# ----------------------------- Pallas kernel -----------------------------

def _fused_kernel(x_ref, mask_ref, w_ref, wc_ref, scale_ref, shift_ref, o_ref):
    """One block of V*TB rows, JOINT-MAJOR: row = i*TB + b (joint i, frame b).

    out = relu( shift_out((shift_in(x) * mask) @ W) * scale1 + x @ Wc' + shift_total )
    """
    x = x_ref[...]                                   # (n, Cin), n = V*TB
    n, cin = x.shape
    cout = w_ref.shape[1]
    tb = n // V                                      # frames per block (multiple of 8)

    # ---- shift_in: xs[i*TB+b, j] = x[((i + j%V) % V)*TB + b, j] ----
    # For channel group s = j % V this is a cyclic roll of the rows by s*TB (aligned).
    cmod_in = lax.broadcasted_iota(jnp.int32, (1, cin), 1) % V
    xs = x                                           # group s = 0 is the identity
    for s in range(1, min(cin, V)):
        off = s * tb                                 # multiple of 8 -> aligned slices
        sh = jnp.concatenate([x[off:, :], x[:off, :]], axis=0)
        xs = jnp.where(cmod_in == s, sh, xs)

    # masked per-joint Linear (one MXU matmul); Linear_bias is folded into shift_ref
    y = jnp.dot(xs * mask_ref[...], w_ref[...], preferred_element_type=jnp.float32)

    # ---- shift_out: ys[i*TB+b, j] = y[((i - j%V) % V)*TB + b, j] ----
    cmod_out = lax.broadcasted_iota(jnp.int32, (1, cout), 1) % V
    ys = y
    for s in range(1, min(cout, V)):
        off = (V - s) * tb                           # roll rows by -s*TB (aligned)
        sh = jnp.concatenate([y[off:, :], y[:off, :]], axis=0)
        ys = jnp.where(cmod_out == s, sh, ys)

    # residual (1x1 conv with BN2d folded in) + folded BN1d affine + ReLU
    r = jnp.dot(x, wc_ref[...], preferred_element_type=jnp.float32)
    o_ref[...] = jnp.maximum(ys * scale_ref[...] + r + shift_ref[...], 0.0)


# ------------------------------- wrapper -----------------------------------

def _pick_block_rows(t, cin, cout, block_rows):
    """Frames per grid step: multiple of 8, capped so the working set (block +
    resident constants + temporaries, double-buffered) stays well inside every
    generation's default scoped-VMEM limit."""
    per_frame = 4 * V * (6 * cin + 10 * cout)        # bytes, generous estimate
    budget = 8 * 1024 * 1024
    tb = max(8, min(block_rows, budget // max(per_frame, 1)))
    tb = min(tb, ((t + 7) // 8) * 8)                 # don't over-pad short sequences
    tb -= tb % 8
    return max(tb, 8)


def shift_gcn_forward(x0, p, block_rows=64):
    n, c, t, v = x0.shape
    assert v == V
    d = p['W'].shape[1]

    tb = _pick_block_rows(t, c, d, block_rows)
    tp = ((t + tb - 1) // tb) * tb                   # pad frames (per sample) to tb
    g = n * (tp // tb)                               # number of grid blocks
    tbv = tb * V                                     # rows per block

    # ---- constant folding (done once, in XLA) ----
    mask_eff = jnp.tanh(p['mask']) + 1.0                              # (V, Cin)
    scale1 = p['g1'] * lax.rsqrt(p['v1'] + EPS)                       # (V, Cout)  BN1d scale
    if p.get('Wc') is not None:
        scale2 = p['g2'] * lax.rsqrt(p['v2'] + EPS)                   # (1, Cout)  BN2d scale
        wc_fold = p['Wc'] * scale2                                    # (Cin, Cout) conv*BN2
        down_shift = (p['bc'] - p['m2']) * scale2 + p['b2']           # (1, Cout)
    else:                                                             # identity `down`
        wc_fold = jnp.eye(c, d, dtype=jnp.float32)
        down_shift = jnp.zeros((1, d), jnp.float32)
    shift_tot = (p['b1'] - p['m1'] * scale1                           # BN1d shift
                 + p['b'] * scale1                                    # Linear_bias thru BN1d
                 + down_shift)                                        # down-branch shift
    # expand per-(joint, channel) constants to one joint-major block (resident in VMEM)
    mask_t = jnp.repeat(mask_eff, tb, axis=0)                         # (tbv, Cin)
    scale_t = jnp.repeat(scale1, tb, axis=0)                          # (tbv, Cout)
    shift_t = jnp.repeat(shift_tot, tb, axis=0)                       # (tbv, Cout)

    # ---- activations: (N, C, T, V) -> joint-major blocks -> (g*tbv, C), one XLA copy ----
    xp = x0 if tp == t else jnp.pad(x0, ((0, 0), (0, 0), (0, tp - t), (0, 0)))
    x5 = xp.reshape(n, c, tp // tb, tb, v)
    x5 = jnp.transpose(x5, (0, 2, 4, 3, 1))          # (N, G, V, tb, C)
    x2d = x5.reshape(g * tbv, c)

    out2d = pl.pallas_call(
        _fused_kernel,
        out_shape=jax.ShapeDtypeStruct((g * tbv, d), jnp.float32),
        grid=(g,),
        in_specs=[
            pl.BlockSpec((tbv, c), lambda i: (i, 0)),   # x rows (streamed)
            pl.BlockSpec((tbv, c), lambda i: (0, 0)),   # mask tile   (resident)
            pl.BlockSpec((c, d), lambda i: (0, 0)),     # W           (resident)
            pl.BlockSpec((c, d), lambda i: (0, 0)),     # Wc folded   (resident)
            pl.BlockSpec((tbv, d), lambda i: (0, 0)),   # BN1d scale  (resident)
            pl.BlockSpec((tbv, d), lambda i: (0, 0)),   # total shift (resident)
        ],
        out_specs=pl.BlockSpec((tbv, d), lambda i: (i, 0)),
        compiler_params=pltpu.CompilerParams(
            dimension_semantics=("parallel",)),
    )(x2d, mask_t, p['W'], wc_fold, scale_t, shift_t)

    # glue: (g*tbv, Cout) -> (N, Cout, T, V)
    out = out2d.reshape(n, tp // tb, v, tb, d)
    out = jnp.transpose(out, (0, 4, 1, 3, 2)).reshape(n, d, tp, v)
    return out[:, :, :t, :]


def init_params(key, in_channels, out_channels):
    """Deterministic synthetic parameters matching the module's shapes."""
    ks = jax.random.split(key, 13)
    p = {}
    # Linear_weight (Cin, Cout), Linear_bias (1,1,Cout) -> stored (1, Cout)
    p['W'] = jax.random.normal(ks[0], (in_channels, out_channels), jnp.float32) * math.sqrt(1.0 / out_channels)
    p['b'] = 0.1 * jax.random.normal(ks[1], (1, out_channels), jnp.float32)
    # Feature_Mask (1, 25, Cin) -> stored (25, Cin)
    p['mask'] = 0.5 * jax.random.normal(ks[2], (V, in_channels), jnp.float32)
    # BatchNorm1d(25 * Cout), params stored (25, Cout) row-major (== flat w*Cout+d)
    p['g1'] = 1.0 + 0.1 * jax.random.normal(ks[3], (V, out_channels), jnp.float32)
    p['b1'] = 0.1 * jax.random.normal(ks[4], (V, out_channels), jnp.float32)
    p['m1'] = 0.1 * jax.random.normal(ks[5], (V, out_channels), jnp.float32)
    p['v1'] = 0.5 + jnp.abs(jax.random.normal(ks[6], (V, out_channels), jnp.float32))
    # down: Conv2d(Cin, Cout, 1) weight (Cout,Cin,1,1) stored transposed (Cin,Cout)
    p['Wc'] = jax.random.normal(ks[7], (in_channels, out_channels), jnp.float32) * math.sqrt(2.0 / out_channels)
    p['bc'] = 0.05 * jax.random.normal(ks[8], (1, out_channels), jnp.float32)
    # down: BatchNorm2d(Cout), per-channel params stored (1, Cout)
    p['g2'] = 1.0 + 0.1 * jax.random.normal(ks[9], (1, out_channels), jnp.float32)
    p['b2'] = 0.1 * jax.random.normal(ks[10], (1, out_channels), jnp.float32)
    p['m2'] = 0.1 * jax.random.normal(ks[11], (1, out_channels), jnp.float32)
    p['v2'] = 0.5 + jnp.abs(jax.random.normal(ks[12], (1, out_channels), jnp.float32))
    p['shift_in'] = _shift_indices(in_channels, +1)
    p['shift_out'] = _shift_indices(out_channels, -1)
    return p


# Pure-JAX reference (mirrors the PyTorch forward, eval-mode BN, unfolded params)
def shift_gcn_reference(x0, p):
    n, c, t, v = x0.shape
    d = p['W'].shape[1]
    hp = lax.Precision.HIGHEST
    x = jnp.transpose(x0, (0, 2, 3, 1)).reshape(n * t, v * c)
    x = jnp.take(x, p['shift_in'], axis=1).reshape(n * t, v, c)
    x = x * (jnp.tanh(p['mask']) + 1.0)[None]
    x = jnp.einsum('nwc,cd->nwd', x, p['W'], precision=hp) + p['b'][None]
    x = jnp.take(x.reshape(n * t, v * d), p['shift_out'], axis=1)
    g1, b1 = p['g1'].reshape(-1), p['b1'].reshape(-1)
    m1, v1 = p['m1'].reshape(-1), p['v1'].reshape(-1)
    x = (x - m1) * (g1 / jnp.sqrt(v1 + EPS)) + b1
    x = x.reshape(n, t, v, d).transpose(0, 3, 1, 2)                      # (N, Cout, T, V)
    r = jnp.einsum('nctv,cd->ndtv', x0, p['Wc'], precision=hp) + p['bc'].reshape(1, d, 1, 1)
    g2, b2 = p['g2'].reshape(1, d, 1, 1), p['b2'].reshape(1, d, 1, 1)
    m2, v2 = p['m2'].reshape(1, d, 1, 1), p['v2'].reshape(1, d, 1, 1)
    r = (r - m2) * (g2 / jnp.sqrt(v2 + EPS)) + b2
    return jnp.maximum(x + r, 0.0)


if __name__ == "__main__":
    key = jax.random.PRNGKey(0)
    k_x, k_p = jax.random.split(key)

    n, c_in, t = 2, 4, 8
    c_out = 8                      # in_channels != out_channels -> exercises `down`
    x0 = jax.random.normal(k_x, (n, c_in, t, V), dtype=jnp.float32)
    params = init_params(k_p, c_in, c_out)

    fwd = jax.jit(lambda xx, pp: shift_gcn_forward(xx, pp, block_rows=64))
    out = fwd(x0, params)
    out = jax.block_until_ready(out)

    ref = shift_gcn_reference(x0, params)
    err = float(jnp.max(jnp.abs(out - ref)))
    assert out.shape == (n, c_out, t, V)
    if err < 5e-3:
        print("KERNEL_OK")
    else:
        print(f"MISMATCH max_abs_err={err}")
</pallas_src>

<mosaic_0001>
module attributes {stable_mosaic.version = 11 : i64} {
  func.func @_fused_kernel(%arg0: i32, %arg1: memref<200x4xf32, #tpu.memory_space<vmem>>, %arg2: memref<200x4xf32, #tpu.memory_space<vmem>>, %arg3: memref<4x8xf32, #tpu.memory_space<vmem>>, %arg4: memref<4x8xf32, #tpu.memory_space<vmem>>, %arg5: memref<200x8xf32, #tpu.memory_space<vmem>>, %arg6: memref<200x8xf32, #tpu.memory_space<vmem>>, %arg7: memref<200x8xf32, #tpu.memory_space<vmem>>) attributes {dimension_semantics = [#tpu.dimension_semantics<parallel>], iteration_bounds = array<i64: 2>, scalar_prefetch = 0 : i64, scratch_operands = 0 : i64, tpu.core_type = #tpu.core_type<tc>, window_params = [{transform_indices = @transform_0, window_bounds = array<i64: 200, 4>}, {pipeline_mode = #tpu.pipeline_mode<synchronous>, transform_indices = @transform_1, window_bounds = array<i64: 200, 4>}, {pipeline_mode = #tpu.pipeline_mode<synchronous>, transform_indices = @transform_2, window_bounds = array<i64: 4, 8>}, {pipeline_mode = #tpu.pipeline_mode<synchronous>, transform_indices = @transform_3, window_bounds = array<i64: 4, 8>}, {pipeline_mode = #tpu.pipeline_mode<synchronous>, transform_indices = @transform_4, window_bounds = array<i64: 200, 8>}, {pipeline_mode = #tpu.pipeline_mode<synchronous>, transform_indices = @transform_5, window_bounds = array<i64: 200, 8>}, {transform_indices = @transform_6, window_bounds = array<i64: 200, 8>}]} {
    %c0 = arith.constant 0 : index
    %c0_0 = arith.constant 0 : index
    %0 = vector.load %arg1[%c0, %c0_0] : memref<200x4xf32, #tpu.memory_space<vmem>>, vector<200x4xf32>
    %1 = tpu.iota {dimensions = array<i32: 1>} : vector<1x4xi32>
    %c25_i32 = arith.constant 25 : i32
    %c0_i32 = arith.constant 0 : i32
    %2 = arith.cmpi eq, %c25_i32, %c0_i32 : i32
    %c1_i32 = arith.constant 1 : i32
    %3 = arith.select %2, %c1_i32, %c25_i32 : i32
    %4 = vector.broadcast %3 : i32 to vector<1x4xi32>
    %5 = arith.remsi %1, %4 : vector<1x4xi32>
    %c0_i32_1 = arith.constant 0 : i32
    %6 = vector.broadcast %c0_i32_1 : i32 to vector<1x4xi32>
    %7 = arith.cmpi ne, %5, %6 : vector<1x4xi32>
    %c0_i32_2 = arith.constant 0 : i32
    %8 = vector.broadcast %c0_i32_2 : i32 to vector<1x4xi32>
    %9 = arith.cmpi slt, %5, %8 : vector<1x4xi32>
    %c0_i32_3 = arith.constant 0 : i32
    %10 = arith.cmpi slt, %3, %c0_i32_3 : i32
    %11 = vector.broadcast %10 : i1 to vector<1x4xi1>
    %12 = vector.broadcast %11 : vector<1x4xi1> to vector<1x4xi1>
    %13 = arith.xori %9, %12 : vector<1x4xi1>
    %14 = arith.andi %13, %7 : vector<1x4xi1>
    %15 = vector.broadcast %3 : i32 to vector<1x4xi32>
    %16 = arith.addi %5, %15 : vector<1x4xi32>
    %17 = arith.select %14, %16, %5 : vector<1x4xi1>, vector<1x4xi32>
    %18 = vector.extract_strided_slice %0 {offsets = [8, 0], sizes = [192, 4], strides = [1, 1]} : vector<200x4xf32> to vector<192x4xf32>
    %19 = vector.extract_strided_slice %0 {offsets = [0, 0], sizes = [8, 4], strides = [1, 1]} : vector<200x4xf32> to vector<8x4xf32>
    %20 = tpu.concatenate %18, %19 in 0 : vector<192x4xf32>, vector<8x4xf32> -> vector<200x4xf32>
    %c1_i32_4 = arith.constant 1 : i32
    %21 = vector.broadcast %c1_i32_4 : i32 to vector<1x4xi32>
    %22 = arith.cmpi eq, %17, %21 : vector<1x4xi32>
    %23 = vector.shape_cast %22 : vector<1x4xi1> to vector<1x4xi1>
    %24 = vector.broadcast %23 : vector<1x4xi1> to vector<200x4xi1>
    %25 = arith.select %24, %20, %0 : vector<200x4xi1>, vector<200x4xf32>
    %26 = vector.extract_strided_slice %0 {offsets = [16, 0], sizes = [184, 4], strides = [1, 1]} : vector<200x4xf32> to vector<184x4xf32>
    %27 = vector.extract_strided_slice %0 {offsets = [0, 0], sizes = [16, 4], strides = [1, 1]} : vector<200x4xf32> to vector<16x4xf32>
    %28 = tpu.concatenate %26, %27 in 0 : vector<184x4xf32>, vector<16x4xf32> -> vector<200x4xf32>
    %c2_i32 = arith.constant 2 : i32
    %29 = vector.broadcast %c2_i32 : i32 to vector<1x4xi32>
    %30 = arith.cmpi eq, %17, %29 : vector<1x4xi32>
    %31 = vector.shape_cast %30 : vector<1x4xi1> to vector<1x4xi1>
    %32 = vector.broadcast %31 : vector<1x4xi1> to vector<200x4xi1>
    %33 = arith.select %32, %28, %25 : vector<200x4xi1>, vector<200x4xf32>
    %34 = vector.extract_strided_slice %0 {offsets = [24, 0], sizes = [176, 4], strides = [1, 1]} : vector<200x4xf32> to vector<176x4xf32>
    %35 = vector.extract_strided_slice %0 {offsets = [0, 0], sizes = [24, 4], strides = [1, 1]} : vector<200x4xf32> to vector<24x4xf32>
    %36 = tpu.concatenate %34, %35 in 0 : vector<176x4xf32>, vector<24x4xf32> -> vector<200x4xf32>
    %c3_i32 = arith.constant 3 : i32
    %37 = vector.broadcast %c3_i32 : i32 to vector<1x4xi32>
    %38 = arith.cmpi eq, %17, %37 : vector<1x4xi32>
    %39 = vector.shape_cast %38 : vector<1x4xi1> to vector<1x4xi1>
    %40 = vector.broadcast %39 : vector<1x4xi1> to vector<200x4xi1>
    %41 = arith.select %40, %36, %33 : vector<200x4xi1>, vector<200x4xf32>
    %c0_5 = arith.constant 0 : index
    %c0_6 = arith.constant 0 : index
    %42 = vector.load %arg2[%c0_5, %c0_6] : memref<200x4xf32, #tpu.memory_space<vmem>>, vector<200x4xf32>
    %43 = arith.mulf %41, %42 : vector<200x4xf32>
    %c0_7 = arith.constant 0 : index
    %c0_8 = arith.constant 0 : index
    %44 = vector.load %arg3[%c0_7, %c0_8] : memref<4x8xf32, #tpu.memory_space<vmem>>, vector<4x8xf32>
    %cst = arith.constant dense<0.000000e+00> : vector<200x8xf32>
    %45 = tpu.matmul %43, %44, %cst {dimension_numbers = #tpu.dot_dimension_numbers<[1], [0], [0], [1], [0, 0, 1, 1], [], []>} : vector<200x4xf32>, vector<4x8xf32>, vector<200x8xf32> -> vector<200x8xf32>
    %46 = tpu.iota {dimensions = array<i32: 1>} : vector<1x8xi32>
    %c25_i32_9 = arith.constant 25 : i32
    %c0_i32_10 = arith.constant 0 : i32
    %47 = arith.cmpi eq, %c25_i32_9, %c0_i32_10 : i32
    %c1_i32_11 = arith.constant 1 : i32
    %48 = arith.select %47, %c1_i32_11, %c25_i32_9 : i32
    %49 = vector.broadcast %48 : i32 to vector<1x8xi32>
    %50 = arith.remsi %46, %49 : vector<1x8xi32>
    %c0_i32_12 = arith.constant 0 : i32
    %51 = vector.broadcast %c0_i32_12 : i32 to vector<1x8xi32>
    %52 = arith.cmpi ne, %50, %51 : vector<1x8xi32>
    %c0_i32_13 = arith.constant 0 : i32
    %53 = vector.broadcast %c0_i32_13 : i32 to vector<1x8xi32>
    %54 = arith.cmpi slt, %50, %53 : vector<1x8xi32>
    %c0_i32_14 = arith.constant 0 : i32
    %55 = arith.cmpi slt, %48, %c0_i32_14 : i32
    %56 = vector.broadcast %55 : i1 to vector<1x8xi1>
    %57 = vector.broadcast %56 : vector<1x8xi1> to vector<1x8xi1>
    %58 = arith.xori %54, %57 : vector<1x8xi1>
    %59 = arith.andi %58, %52 : vector<1x8xi1>
    %60 = vector.broadcast %48 : i32 to vector<1x8xi32>
    %61 = arith.addi %50, %60 : vector<1x8xi32>
    %62 = arith.select %59, %61, %50 : vector<1x8xi1>, vector<1x8xi32>
    %63 = vector.extract_strided_slice %45 {offsets = [192, 0], sizes = [8, 8], strides = [1, 1]} : vector<200x8xf32> to vector<8x8xf32>
    %64 = vector.extract_strided_slice %45 {offsets = [0, 0], sizes = [192, 8], strides = [1, 1]} : vector<200x8xf32> to vector<192x8xf32>
    %65 = tpu.concatenate %63, %64 in 0 : vector<8x8xf32>, vector<192x8xf32> -> vector<200x8xf32>
    %c1_i32_15 = arith.constant 1 : i32
    %66 = vector.broadcast %c1_i32_15 : i32 to vector<1x8xi32>
    %67 = arith.cmpi eq, %62, %66 : vector<1x8xi32>
    %68 = vector.shape_cast %67 : vector<1x8xi1> to vector<1x8xi1>
    %69 = vector.broadcast %68 : vector<1x8xi1> to vector<200x8xi1>
    %70 = arith.select %69, %65, %45 : vector<200x8xi1>, vector<200x8xf32>
    %71 = vector.extract_strided_slice %45 {offsets = [184, 0], sizes = [16, 8], strides = [1, 1]} : vector<200x8xf32> to vector<16x8xf32>
    %72 = vector.extract_strided_slice %45 {offsets = [0, 0], sizes = [184, 8], strides = [1, 1]} : vector<200x8xf32> to vector<184x8xf32>
    %73 = tpu.concatenate %71, %72 in 0 : vector<16x8xf32>, vector<184x8xf32> -> vector<200x8xf32>
    %c2_i32_16 = arith.constant 2 : i32
    %74 = vector.broadcast %c2_i32_16 : i32 to vector<1x8xi32>
    %75 = arith.cmpi eq, %62, %74 : vector<1x8xi32>
    %76 = vector.shape_cast %75 : vector<1x8xi1> to vector<1x8xi1>
    %77 = vector.broadcast %76 : vector<1x8xi1> to vector<200x8xi1>
    %78 = arith.select %77, %73, %70 : vector<200x8xi1>, vector<200x8xf32>
    %79 = vector.extract_strided_slice %45 {offsets = [176, 0], sizes = [24, 8], strides = [1, 1]} : vector<200x8xf32> to vector<24x8xf32>
    %80 = vector.extract_strided_slice %45 {offsets = [0, 0], sizes = [176, 8], strides = [1, 1]} : vector<200x8xf32> to vector<176x8xf32>
    %81 = tpu.concatenate %79, %80 in 0 : vector<24x8xf32>, vector<176x8xf32> -> vector<200x8xf32>
    %c3_i32_17 = arith.constant 3 : i32
    %82 = vector.broadcast %c3_i32_17 : i32 to vector<1x8xi32>
    %83 = arith.cmpi eq, %62, %82 : vector<1x8xi32>
    %84 = vector.shape_cast %83 : vector<1x8xi1> to vector<1x8xi1>
    %85 = vector.broadcast %84 : vector<1x8xi1> to vector<200x8xi1>
    %86 = arith.select %85, %81, %78 : vector<200x8xi1>, vector<200x8xf32>
    %87 = vector.extract_strided_slice %45 {offsets = [168, 0], sizes = [32, 8], strides = [1, 1]} : vector<200x8xf32> to vector<32x8xf32>
    %88 = vector.extract_strided_slice %45 {offsets = [0, 0], sizes = [168, 8], strides = [1, 1]} : vector<200x8xf32> to vector<168x8xf32>
    %89 = tpu.concatenate %87, %88 in 0 : vector<32x8xf32>, vector<168x8xf32> -> vector<200x8xf32>
    %c4_i32 = arith.constant 4 : i32
    %90 = vector.broadcast %c4_i32 : i32 to vector<1x8xi32>
    %91 = arith.cmpi eq, %62, %90 : vector<1x8xi32>
    %92 = vector.shape_cast %91 : vector<1x8xi1> to vector<1x8xi1>
    %93 = vector.broadcast %92 : vector<1x8xi1> to vector<200x8xi1>
    %94 = arith.select %93, %89, %86 : vector<200x8xi1>, vector<200x8xf32>
    %95 = vector.extract_strided_slice %45 {offsets = [160, 0], sizes = [40, 8], strides = [1, 1]} : vector<200x8xf32> to vector<40x8xf32>
    %96 = vector.extract_strided_slice %45 {offsets = [0, 0], sizes = [160, 8], strides = [1, 1]} : vector<200x8xf32> to vector<160x8xf32>
    %97 = tpu.concatenate %95, %96 in 0 : vector<40x8xf32>, vector<160x8xf32> -> vector<200x8xf32>
    %c5_i32 = arith.constant 5 : i32
    %98 = vector.broadcast %c5_i32 : i32 to vector<1x8xi32>
    %99 = arith.cmpi eq, %62, %98 : vector<1x8xi32>
    %100 = vector.shape_cast %99 : vector<1x8xi1> to vector<1x8xi1>
    %101 = vector.broadcast %100 : vector<1x8xi1> to vector<200x8xi1>
    %102 = arith.select %101, %97, %94 : vector<200x8xi1>, vector<200x8xf32>
    %103 = vector.extract_strided_slice %45 {offsets = [152, 0], sizes = [48, 8], strides = [1, 1]} : vector<200x8xf32> to vector<48x8xf32>
    %104 = vector.extract_strided_slice %45 {offsets = [0, 0], sizes = [152, 8], strides = [1, 1]} : vector<200x8xf32> to vector<152x8xf32>
    %105 = tpu.concatenate %103, %104 in 0 : vector<48x8xf32>, vector<152x8xf32> -> vector<200x8xf32>
    %c6_i32 = arith.constant 6 : i32
    %106 = vector.broadcast %c6_i32 : i32 to vector<1x8xi32>
    %107 = arith.cmpi eq, %62, %106 : vector<1x8xi32>
    %108 = vector.shape_cast %107 : vector<1x8xi1> to vector<1x8xi1>
    %109 = vector.broadcast %108 : vector<1x8xi1> to vector<200x8xi1>
    %110 = arith.select %109, %105, %102 : vector<200x8xi1>, vector<200x8xf32>
    %111 = vector.extract_strided_slice %45 {offsets = [144, 0], sizes = [56, 8], strides = [1, 1]} : vector<200x8xf32> to vector<56x8xf32>
    %112 = vector.extract_strided_slice %45 {offsets = [0, 0], sizes = [144, 8], strides = [1, 1]} : vector<200x8xf32> to vector<144x8xf32>
    %113 = tpu.concatenate %111, %112 in 0 : vector<56x8xf32>, vector<144x8xf32> -> vector<200x8xf32>
    %c7_i32 = arith.constant 7 : i32
    %114 = vector.broadcast %c7_i32 : i32 to vector<1x8xi32>
    %115 = arith.cmpi eq, %62, %114 : vector<1x8xi32>
    %116 = vector.shape_cast %115 : vector<1x8xi1> to vector<1x8xi1>
    %117 = vector.broadcast %116 : vector<1x8xi1> to vector<200x8xi1>
    %118 = arith.select %117, %113, %110 : vector<200x8xi1>, vector<200x8xf32>
    %c0_18 = arith.constant 0 : index
    %c0_19 = arith.constant 0 : index
    %119 = vector.load %arg4[%c0_18, %c0_19] : memref<4x8xf32, #tpu.memory_space<vmem>>, vector<4x8xf32>
    %cst_20 = arith.constant dense<0.000000e+00> : vector<200x8xf32>
    %120 = tpu.matmul %0, %119, %cst_20 {dimension_numbers = #tpu.dot_dimension_numbers<[1], [0], [0], [1], [0, 0, 1, 1], [], []>} : vector<200x4xf32>, vector<4x8xf32>, vector<200x8xf32> -> vector<200x8xf32>
    %c0_21 = arith.constant 0 : index
    %c0_22 = arith.constant 0 : index
    %121 = vector.load %arg5[%c0_21, %c0_22] : memref<200x8xf32, #tpu.memory_space<vmem>>, vector<200x8xf32>
    %122 = arith.mulf %118, %121 : vector<200x8xf32>
    %123 = arith.addf %122, %120 : vector<200x8xf32>
    %c0_23 = arith.constant 0 : index
    %c0_24 = arith.constant 0 : index
    %124 = vector.load %arg6[%c0_23, %c0_24] : memref<200x8xf32, #tpu.memory_space<vmem>>, vector<200x8xf32>
    %125 = arith.addf %123, %124 : vector<200x8xf32>
    %cst_25 = arith.constant 0.000000e+00 : f32
    %126 = vector.broadcast %cst_25 : f32 to vector<200x8xf32>
    %127 = arith.maximumf %125, %126 : vector<200x8xf32>
    %c0_26 = arith.constant 0 : index
    %c0_27 = arith.constant 0 : index
    %128 = vector.load %arg7[%c0_26, %c0_27] : memref<200x8xf32, #tpu.memory_space<vmem>>, vector<200x8xf32>
    tpu.vector_store %arg7[%c0_26, %c0_27], %127 {strides = array<i32>} : memref<200x8xf32, #tpu.memory_space<vmem>>, vector<200x8xf32>,
    return
  }
  func.func @transform_0(%arg0: i32) -> (i32, i32) {
    %c0_i32 = arith.constant 0 : i32
    %c0_i32_0 = arith.constant 0 : i32
    return %arg0, %c0_i32 : i32, i32
  }
  func.func @transform_1(%arg0: i32) -> (i32, i32) {
    %c0_i32 = arith.constant 0 : i32
    %c0_i32_0 = arith.constant 0 : i32
    %c0_i32_1 = arith.constant 0 : i32
    return %c0_i32, %c0_i32_0 : i32, i32
  }
  func.func @transform_2(%arg0: i32) -> (i32, i32) {
    %c0_i32 = arith.constant 0 : i32
    %c0_i32_0 = arith.constant 0 : i32
    %c0_i32_1 = arith.constant 0 : i32
    return %c0_i32, %c0_i32_0 : i32, i32
  }
  func.func @transform_3(%arg0: i32) -> (i32, i32) {
    %c0_i32 = arith.constant 0 : i32
    %c0_i32_0 = arith.constant 0 : i32
    %c0_i32_1 = arith.constant 0 : i32
    return %c0_i32, %c0_i32_0 : i32, i32
  }
  func.func @transform_4(%arg0: i32) -> (i32, i32) {
    %c0_i32 = arith.constant 0 : i32
    %c0_i32_0 = arith.constant 0 : i32
    %c0_i32_1 = arith.constant 0 : i32
    return %c0_i32, %c0_i32_0 : i32, i32
  }
  func.func @transform_5(%arg0: i32) -> (i32, i32) {
    %c0_i32 = arith.constant 0 : i32
    %c0_i32_0 = arith.constant 0 : i32
    %c0_i32_1 = arith.constant 0 : i32
    return %c0_i32, %c0_i32_0 : i32, i32
  }
  func.func @transform_6(%arg0: i32) -> (i32, i32) {
    %c0_i32 = arith.constant 0 : i32
    %c0_i32_0 = arith.constant 0 : i32
    return %arg0, %c0_i32 : i32, i32
  }
}

</mosaic_0001>

<llo_original>
// kernel: _lambda_.1
$region0: #{_lambda_.1}
  #allocation0 [shape = 'u32[]', space=smem, size = 0x4, offset = 0x4, fixed_abs, tag = 'smem constant byte address 0x4 - core index']
  #allocation1 [shape = 'u32[72,128]{1,0:T(1,128)}', space=vmem, size = 0x9000, scoped, tag = 'internal scratch']
  %s0 = inlined_call_operand.vmem [shape: f32[400,4], index: 0, kind: input, shape index: {}]
  %s1 = inlined_call_operand.vmem [shape: f32[200,4], index: 1, kind: input, shape index: {}]
  %s2 = inlined_call_operand.vmem [shape: f32[4,8], index: 2, kind: input, shape index: {}]
  %s3 = inlined_call_operand.vmem [shape: f32[4,8], index: 3, kind: input, shape index: {}]
  %s4 = inlined_call_operand.vmem [shape: f32[200,8], index: 4, kind: input, shape index: {}]
  %s5 = inlined_call_operand.vmem [shape: f32[200,8], index: 5, kind: input, shape index: {}]
  %s6 = inlined_call_operand.vmem [shape: f32[400,8], index: 6, kind: output, shape index: {}]
  %s7 = sld [smem:[#allocation0]]
  $region57: #{_lambda_.1} parent=0
    _
  %s9 = ssub.s32 1, %s7
  %s10 = scalar_select 0, %s9, %s7
  loop: start=0, step=1, limit=4
  $region2: #{_lambda_.1} parent=0 // loop_pre_header
    _
  $region3: #{_lambda_.1} parent=0 // loop_header
    %s12 = sphi 0, %s16
    %p13 = scmp.ge.s32.totalorder %s12, 4
    %s22 = sphi 0, %s24
    %s25 = sphi 0, %s22
    %s26 = sphi 0, %s25
    %s42 = sphi 0, %s26
    %s46 = sphi 0, %s46
    %s48 = sphi 0, %s46
    %s49 = sphi 0, %s48
    %s63 = sphi 0, %s49
    %s67 = sphi 0, %s67
    %s69 = sphi 0, %s67
    %s70 = sphi 0, %s69
    %s84 = sphi 0, %s70
    %s88 = sphi 0, %s88
    %s90 = sphi 0, %s88
    %s91 = sphi 0, %s90
    %s105 = sphi 0, %s91
    %s109 = sphi 0, %s109
    %s111 = sphi 0, %s109
    %s112 = sphi 0, %s111
    %s126 = sphi 0, %s112
    %s130 = sphi 0, %s130
    %s132 = sphi 0, %s130
    %s133 = sphi 0, %s132
    %s147 = sphi 0, %s133
    %s153 = sphi 0, %s155
    %s156 = sphi 0, %s153
    %s157 = sphi 0, %s156
    %s173 = sphi 0, %s157
  $region4: #{_lambda_.1} parent=0 // loop_header_branch
    %15 = sbr.rel (%p13) target = $region8
  $region5: #{_lambda_.1} parent=0 // loop_body
    %s17 = ssub.s32 %s12, 1
    %s18 = ssub.s32 %s12, 2
    %s19 = sadd.s32 %s12, 1
    %s20 = ssub.s32 %s12, %s19
    %p21 = scmp.eq.s32.totalorder %s20, 0
    %s23 = sadd.s32 %s22, 1
    %s24 = scalar_select %p21, %s22, %s23
    %p27 = pneg %p21
    %p28 = scmp.eq.s32.totalorder %s12, 1
    %p29 = por %p27, %p28
    %p30 = scmp.ne.s32.totalorder %s22, %s25
    %p31 = scmp.eq.s32.totalorder %s12, 0
    %p32 = por %p30, %p31
    %p33 = scmp.ne.s32.totalorder %s22, %s25
    %p34 = scmp.eq.s32.totalorder %s17, 1
    %p35 = por %p33, %p34
    %p36 = scmp.ne.s32.totalorder %s25, %s26
    %p37 = scmp.eq.s32.totalorder %s17, 0
    %p38 = por %p36, %p37
    %p39 = scmp.ne.s32.totalorder %s25, %s26
    %p40 = scmp.eq.s32.totalorder %s18, 1
    %p41 = por %p39, %p40
    %p43 = scmp.ne.s32.totalorder %s26, %s42
    %p44 = scmp.eq.s32.totalorder %s18, 0
    %p45 = por %p43, %p44
    %s47 = sadd.s32 %s46, 1
    %p50 = scmp.eq.s32.totalorder %s12, 1
    %p51 = scmp.ne.s32.totalorder %s46, %s48
    %p52 = scmp.eq.s32.totalorder %s12, 0
    %p53 = por %p51, %p52
    %p54 = scmp.ne.s32.totalorder %s46, %s48
    %p55 = scmp.eq.s32.totalorder %s17, 1
    %p56 = por %p54, %p55
    %p57 = scmp.ne.s32.totalorder %s48, %s49
    %p58 = scmp.eq.s32.totalorder %s17, 0
    %p59 = por %p57, %p58
    %p60 = scmp.ne.s32.totalorder %s48, %s49
    %p61 = scmp.eq.s32.totalorder %s18, 1
    %p62 = por %p60, %p61
    %p64 = scmp.ne.s32.totalorder %s49, %s63
    %p65 = scmp.eq.s32.totalorder %s18, 0
    %p66 = por %p64, %p65
    %s68 = sadd.s32 %s67, 1
    %p71 = scmp.eq.s32.totalorder %s12, 1
    %p72 = scmp.ne.s32.totalorder %s67, %s69
    %p73 = scmp.eq.s32.totalorder %s12, 0
    %p74 = por %p72, %p73
    %p75 = scmp.ne.s32.totalorder %s67, %s69
    %p76 = scmp.eq.s32.totalorder %s17, 1
    %p77 = por %p75, %p76
    %p78 = scmp.ne.s32.totalorder %s69, %s70
    %p79 = scmp.eq.s32.totalorder %s17, 0
    %p80 = por %p78, %p79
    %p81 = scmp.ne.s32.totalorder %s69, %s70
    %p82 = scmp.eq.s32.totalorder %s18, 1
    %p83 = por %p81, %p82
    %p85 = scmp.ne.s32.totalorder %s70, %s84
    %p86 = scmp.eq.s32.totalorder %s18, 0
    %p87 = por %p85, %p86
    %s89 = sadd.s32 %s88, 1
    %p92 = scmp.eq.s32.totalorder %s12, 1
    %p93 = scmp.ne.s32.totalorder %s88, %s90
    %p94 = scmp.eq.s32.totalorder %s12, 0
    %p95 = por %p93, %p94
    %p96 = scmp.ne.s32.totalorder %s88, %s90
    %p97 = scmp.eq.s32.totalorder %s17, 1
    %p98 = por %p96, %p97
    %p99 = scmp.ne.s32.totalorder %s90, %s91
    %p100 = scmp.eq.s32.totalorder %s17, 0
    %p101 = por %p99, %p100
    %p102 = scmp.ne.s32.totalorder %s90, %s91
    %p103 = scmp.eq.s32.totalorder %s18, 1
    %p104 = por %p102, %p103
    %p106 = scmp.ne.s32.totalorder %s91, %s105
    %p107 = scmp.eq.s32.totalorder %s18, 0
    %p108 = por %p106, %p107
    %s110 = sadd.s32 %s109, 1
    %p113 = scmp.eq.s32.totalorder %s12, 1
    %p114 = scmp.ne.s32.totalorder %s109, %s111
    %p115 = scmp.eq.s32.totalorder %s12, 0
    %p116 = por %p114, %p115
    %p117 = scmp.ne.s32.totalorder %s109, %s111
    %p118 = scmp.eq.s32.totalorder %s17, 1
    %p119 = por %p117, %p118
    %p120 = scmp.ne.s32.totalorder %s111, %s112
    %p121 = scmp.eq.s32.totalorder %s17, 0
    %p122 = por %p120, %p121
    %p123 = scmp.ne.s32.totalorder %s111, %s112
    %p124 = scmp.eq.s32.totalorder %s18, 1
    %p125 = por %p123, %p124
    %p127 = scmp.ne.s32.totalorder %s112, %s126
    %p128 = scmp.eq.s32.totalorder %s18, 0
    %p129 = por %p127, %p128
    %s131 = sadd.s32 %s130, 1
    %p134 = scmp.eq.s32.totalorder %s12, 1
    %p135 = scmp.ne.s32.totalorder %s130, %s132
    %p136 = scmp.eq.s32.totalorder %s12, 0
    %p137 = por %p135, %p136
    %p138 = scmp.ne.s32.totalorder %s130, %s132
    %p139 = scmp.eq.s32.totalorder %s17, 1
    %p140 = por %p138, %p139
    %p141 = scmp.ne.s32.totalorder %s132, %s133
    %p142 = scmp.eq.s32.totalorder %s17, 0
    %p143 = por %p141, %p142
    %p144 = scmp.ne.s32.totalorder %s132, %s133
    %p145 = scmp.eq.s32.totalorder %s18, 1
    %p146 = por %p144, %p145
    %p148 = scmp.ne.s32.totalorder %s133, %s147
    %p149 = scmp.eq.s32.totalorder %s18, 0
    %p150 = por %p148, %p149
    %s151 = ssub.s32 %s12, %s19
    %p152 = scmp.eq.s32.totalorder %s151, 0
    %s154 = sadd.s32 %s153, 1
    %s155 = scalar_select %p152, %s153, %s154
    %p158 = pneg %p152
    %p159 = scmp.eq.s32.totalorder %s12, 1
    %p160 = por %p158, %p159
    %p161 = scmp.ne.s32.totalorder %s153, %s156
    %p162 = scmp.eq.s32.totalorder %s12, 0
    %p163 = por %p161, %p162
    %p164 = scmp.ne.s32.totalorder %s153, %s156
    %p165 = scmp.eq.s32.totalorder %s17, 1
    %p166 = por %p164, %p165
    %p167 = scmp.ne.s32.totalorder %s156, %s157
    %p168 = scmp.eq.s32.totalorder %s17, 0
    %p169 = por %p167, %p168
    %p170 = scmp.ne.s32.totalorder %s156, %s157
    %p171 = scmp.eq.s32.totalorder %s18, 1
    %p172 = por %p170, %p171
    %p174 = scmp.ne.s32.totalorder %s157, %s173
    %p175 = scmp.eq.s32.totalorder %s18, 0
    %p176 = por %p174, %p175
    %p177 = scmp.le.s32.totalorder 1, %s12
    %p178 = scmp.lt.s32.totalorder %s12, 3
    %p179 = pnand %p177, %p178
    %p180 = pneg %p179
    // Predicated region
    $region9: #{_lambda_.1} parent=5 // pred_check
      _
    $region10: #{_lambda_.1} parent=5 // pred_check_branch
      %182 = sbr.rel (%p179) target = $region12
    $region11: #{_lambda_.1} parent=5 // pred_region
      %s183 = ssub.s32 %s12, 1
      // Predicated region
      $region13: #{_lambda_.1} parent=11 // pred_check
        %p184 = pneg %p59
      $region14: #{_lambda_.1} parent=11 // pred_check_branch
        %186 = sbr.rel (%p184) target = $region16
      $region15: #{_lambda_.1} parent=11 // pred_region
        _
      $region16: #{_lambda_.1} parent=11 // pred_fallthru
        _
      // Predicated region
      $region17: #{_lambda_.1} parent=11 // pred_check
        %p187 = pneg %p80
      $region18: #{_lambda_.1} parent=11 // pred_check_branch
        %189 = sbr.rel (%p187) target = $region20
      $region19: #{_lambda_.1} parent=11 // pred_region
        _
      $region20: #{_lambda_.1} parent=11 // pred_fallthru
        _
      // Predicated region
      $region21: #{_lambda_.1} parent=11 // pred_check
        %p190 = pneg %p101
      $region22: #{_lambda_.1} parent=11 // pred_check_branch
        %192 = sbr.rel (%p190) target = $region24
      $region23: #{_lambda_.1} parent=11 // pred_region
        _
      $region24: #{_lambda_.1} parent=11 // pred_fallthru
        _
      // Predicated region
      $region25: #{_lambda_.1} parent=11 // pred_check
        %p193 = pneg %p122
      $region26: #{_lambda_.1} parent=11 // pred_check_branch
        %195 = sbr.rel (%p193) target = $region28
      $region27: #{_lambda_.1} parent=11 // pred_region
        _
      $region28: #{_lambda_.1} parent=11 // pred_fallthru
        _
      // Predicated region
      $region29: #{_lambda_.1} parent=11 // pred_check
        %p196 = pneg %p143
      $region30: #{_lambda_.1} parent=11 // pred_check_branch
        %198 = sbr.rel (%p196) target = $region32
      $region31: #{_lambda_.1} parent=11 // pred_region
        _
      $region32: #{_lambda_.1} parent=11 // pred_fallthru
        _
    $region12: #{_lambda_.1} parent=5 // pred_fallthru
      _
    %p199 = scmp.lt.s32.totalorder %s12, 2
    // Predicated region
    $region33: #{_lambda_.1} parent=5 // pred_check
      %p200 = pneg %p199
    $region34: #{_lambda_.1} parent=5 // pred_check_branch
      %202 = sbr.rel (%p200) target = $region36
    $region35: #{_lambda_.1} parent=5 // pred_region
      // Predicated region
      $region37: #{_lambda_.1} parent=35 // pred_check
        %p203 = pneg %p32
      $region38: #{_lambda_.1} parent=35 // pred_check_branch
        %205 = sbr.rel (%p203) target = $region40
      $region39: #{_lambda_.1} parent=35 // pred_region
        %s206 = smul.u32 25, %s12
        %p207 = scmp.lt.s32.totalorder %s206, 49
        %s208 = scalar_select %p207, %s206, 49
        %s209 = smul.addr %s208, 8
        %s210 = scalar_lea.vmem %s0, %s209
        %s211 = smul.u32 25, %s12
      $region40: #{_lambda_.1} parent=35 // pred_fallthru
        _
    $region36: #{_lambda_.1} parent=5 // pred_fallthru
      _
    %p212 = scmp.le.s32.totalorder 1, %s12
    %p213 = scmp.lt.s32.totalorder %s12, 3
    %p214 = pnand %p212, %p213
    %p215 = pneg %p214
    // Predicated region
    $region41: #{_lambda_.1} parent=5 // pred_check
      _
    $region42: #{_lambda_.1} parent=5 // pred_check_branch
      %217 = sbr.rel (%p214) target = $region44
    $region43: #{_lambda_.1} parent=5 // pred_region
      %s218 = ssub.s32 %s12, 1
      %s219 = smul.u32 25, %s17
      %p220 = scmp.lt.s32.totalorder %s219, 49
      %s221 = scalar_select %p220, %s219, 49
      %s222 = smul.addr %s221, 8
      %s223 = scalar_lea.vmem %s0, %s222
      %p224 = pneg %p38
      %p225 = pneg %p35
      %p226 = pneg %p59
      %p227 = pneg %p56
      %p228 = pneg %p80
      %p229 = pneg %p77
      %p230 = pneg %p101
      %p231 = pneg %p98
      %p232 = pneg %p122
      %p233 = pneg %p119
      %p234 = pneg %p143
      %p235 = pneg %p140
      %p236 = pneg %p169
      %p237 = pneg %p166
      %s238 = smul.u32 25, %s17
      %p239 = scmp.lt.s32.totalorder %s238, 49
      %s240 = scalar_select %p239, %s238, 49
      %s241 = smul.addr %s240, 8
      %s242 = scalar_lea.vmem %s6, %s241
      %s243 = smul.u32 25, %s17
      %p244 = scmp.lt.s32.totalorder %s243, 49
      %s245 = scalar_select %p244, %s243, 49
      %s246 = smul.addr %s245, 8
      %s247 = scalar_lea.vmem %s0, %s246
      %s248 = smul.u32 25, %s17
      %s249 = smul.u32 25, %s17
      %p250 = scmp.lt.s32.totalorder %s249, 49
      %s251 = scalar_select %p250, %s249, 49
      %s252 = smul.addr %s251, 8
      %s253 = scalar_lea.vmem %s6, %s252
      %s254 = smul.u32 25, %s17
      %v255 = vld [vmem:[%s247] sm:$0xff]
      %v256 = vld [vmem:[%s247 + $0x8] sm:$0xff]
      %v257 = vld [vmem:[%s247 + $0x10] sm:$0xff]
      %v258 = vld [vmem:[%s247 + $0x18] sm:$0xff]
      %v259 = vld [vmem:[%s247 + $0x20] sm:$0xff]
      %v260 = vld [vmem:[%s247 + $0x28] sm:$0xff]
      %v261 = vld [vmem:[%s247 + $0x30] sm:$0xff]
      %v262 = vld [vmem:[%s247 + $0x38] sm:$0xff]
      %v263 = vld [vmem:[%s247 + $0x40] sm:$0xff]
      %v264 = vld [vmem:[%s247 + $0x48] sm:$0xff]
      %v265 = vld [vmem:[%s247 + $0x50] sm:$0xff]
      %v266 = vld [vmem:[%s247 + $0x58] sm:$0xff]
      %v267 = vld [vmem:[%s247 + $0x60] sm:$0xff]
      %v268 = vld [vmem:[%s247 + $0x68] sm:$0xff]
      %v269 = vld [vmem:[%s247 + $0x70] sm:$0xff]
      %v270 = vld [vmem:[%s247 + $0x78] sm:$0xff]
      %v271 = vld [vmem:[%s247 + $0x80] sm:$0xff]
      %v272 = vld [vmem:[%s247 + $0x88] sm:$0xff]
      %v273 = vld [vmem:[%s247 + $0x90] sm:$0xff]
      %v274 = vld [vmem:[%s247 + $0x98] sm:$0xff]
      %v275 = vld [vmem:[%s247 + $0xa0] sm:$0xff]
      %v276 = vld [vmem:[%s247 + $0xa8] sm:$0xff]
      %v277 = vld [vmem:[%s247 + $0xb0] sm:$0xff]
      %v278 = vld [vmem:[%s247 + $0xb8] sm:$0xff]
      %v279 = vld [vmem:[%s247 + $0xc0] sm:$0xff]
      %v280 = vlaneseq
      %v281 = vand.u32 %v280, 127
      %vm282 = vcmp.lt.s32.totalorder %v281, 0
      %v283 = vsub.s32 0, %v281
      %v284 = vsel %vm282, %v283, %v281
      %v285 = vand.u32 %v284, 65535
      %v286 = vshrl.u32 %v284, 16
      %v288 = vmul.u32 %v285, 2622
      %v289 = vmul.u32 %v285, 41943
      %v290 = vmul.u32 %v286, 2622
      %v291 = vmul.u32 %v286, 41943
      %v292 = vshll.u32 %v289, 16
      %v293 = vshrl.u32 %v289, 16
      %v294 = vshll.u32 %v290, 16
      %v295 = vshrl.u32 %v290, 16
      %vm296 = vc.u32 %v288, %v292
      %v297 = vsel %vm296, 1, 0
      %v298 = vadd.s32 %v288, %v292
      %v299 = vadd.s32 %v291, %v297
      %vm300 = vc.u32 %v298, %v294
      %v301 = vsel %vm300, 1, 0
      %v302 = vadd.s32 %v298, %v294
      %v303 = vadd.s32 %v299, %v301
      %v304 = vadd.s32 %v303, %v293
      %v305 = vadd.s32 %v304, %v295
      %v306 = vshrl.u32 %v305, 4
      %v307 = vmul.u32 %v306, 25
      %v308 = vsub.s32 %v284, %v307
      %v309 = vsub.s32 0, %v308
      %v310 = vsel %vm282, %v309, %v308
      %vm311 = vcmp.ne.s32.totalorder %v310, 0
      %vm312 = vcmp.lt.s32.totalorder %v310, 0
      %vm313 = vmand %vm312, %vm311
      %v314 = vadd.s32 %v310, 25
      %v315 = vsel %vm313, %v314, %v310
      %vm316 = vcmp.eq.s32.totalorder %v315, 1
      %v317 = vsel %vm316, 1, 0
      %vm318 = vcmp.eq.s32.totalorder %v317, 1
      %v319 = vsel %vm318, %v256, %v255
      %v320 = vsel %vm318, %v257, %v256
      %v321 = vsel %vm318, %v258, %v257
      %v322 = vsel %vm318, %v259, %v258
      %v323 = vsel %vm318, %v260, %v259
      %v324 = vsel %vm318, %v261, %v260
      %v325 = vsel %vm318, %v262, %v261
      %v326 = vsel %vm318, %v263, %v262
      %v327 = vsel %vm318, %v264, %v263
      %v328 = vsel %vm318, %v265, %v264
      %v329 = vsel %vm318, %v266, %v265
      %v330 = vsel %vm318, %v267, %v266
      %v331 = vsel %vm318, %v268, %v267
      %v332 = vsel %vm318, %v269, %v268
      %v333 = vsel %vm318, %v270, %v269
      %v334 = vsel %vm318, %v271, %v270
      %v335 = vsel %vm318, %v272, %v271
      %v336 = vsel %vm318, %v273, %v272
      %v337 = vsel %vm318, %v274, %v273
      %v338 = vsel %vm318, %v275, %v274
      %v339 = vsel %vm318, %v276, %v275
      %v340 = vsel %vm318, %v277, %v276
      %v341 = vsel %vm318, %v278, %v277
      %v342 = vsel %vm318, %v279, %v278
      %v343 = vsel %vm318, %v255, %v279
      %vm344 = vcmp.eq.s32.totalorder %v315, 2
      %v345 = vsel %vm344, 1, 0
      %vm346 = vcmp.eq.s32.totalorder %v345, 1
      %v347 = vsel %vm346, %v257, %v319
      %v348 = vsel %vm346, %v258, %v320
      %v349 = vsel %vm346, %v259, %v321
      %v350 = vsel %vm346, %v260, %v322
      %v351 = vsel %vm346, %v261, %v323
      %v352 = vsel %vm346, %v262, %v324
      %v353 = vsel %vm346, %v263, %v325
      %v354 = vsel %vm346, %v264, %v326
      %v355 = vsel %vm346, %v265, %v327
      %v356 = vsel %vm346, %v266, %v328
      %v357 = vsel %vm346, %v267, %v329
      %v358 = vsel %vm346, %v268, %v330
      %v359 = vsel %vm346, %v269, %v331
      %v360 = vsel %vm346, %v270, %v332
      %v361 = vsel %vm346, %v271, %v333
      %v362 = vsel %vm346, %v272, %v334
      %v363 = vsel %vm346, %v273, %v335
      %v364 = vsel %vm346, %v274, %v336
      %v365 = vsel %vm346, %v275, %v337
      %v366 = vsel %vm346, %v276, %v338
      %v367 = vsel %vm346, %v277, %v339
      %v368 = vsel %vm346, %v278, %v340
      %v369 = vsel %vm346, %v279, %v341
      %v370 = vsel %vm346, %v255, %v342
      %v371 = vsel %vm346, %v256, %v343
      %vm372 = vcmp.eq.s32.totalorder %v315, 3
      %v373 = vsel %vm372, 1, 0
      %vm374 = vcmp.eq.s32.totalorder %v373, 1
      %v375 = vsel %vm374, %v258, %v347
      %v376 = vsel %vm374, %v259, %v348
      %v377 = vsel %vm374, %v260, %v349
      %v378 = vsel %vm374, %v261, %v350
      %v379 = vsel %vm374, %v262, %v351
      %v380 = vsel %vm374, %v263, %v352
      %v381 = vsel %vm374, %v264, %v353
      %v382 = vsel %vm374, %v265, %v354
      %v383 = vsel %vm374, %v266, %v355
      %v384 = vsel %vm374, %v267, %v356
      %v385 = vsel %vm374, %v268, %v357
      %v386 = vsel %vm374, %v269, %v358
      %v387 = vsel %vm374, %v270, %v359
      %v388 = vsel %vm374, %v271, %v360
      %v389 = vsel %vm374, %v272, %v361
      %v390 = vsel %vm374, %v273, %v362
      %v391 = vsel %vm374, %v274, %v363
      %v392 = vsel %vm374, %v275, %v364
      %v393 = vsel %vm374, %v276, %v365
      %v394 = vsel %vm374, %v277, %v366
      %v395 = vsel %vm374, %v278, %v367
      %v396 = vsel %vm374, %v279, %v368
      %v397 = vsel %vm374, %v255, %v369
      %v398 = vsel %vm374, %v256, %v370
      %v399 = vsel %vm374, %v257, %v371
      %v400 = vld [vmem:[%s1] sm:$0xff]
      %v401 = vld [vmem:[%s1 + $0x8] sm:$0xff]
      %v402 = vld [vmem:[%s1 + $0x10] sm:$0xff]
      %v403 = vld [vmem:[%s1 + $0x18] sm:$0xff]
      %v404 = vld [vmem:[%s1 + $0x20] sm:$0xff]
      %v405 = vld [vmem:[%s1 + $0x28] sm:$0xff]
      %v406 = vld [vmem:[%s1 + $0x30] sm:$0xff]
      %v407 = vld [vmem:[%s1 + $0x38] sm:$0xff]
      %v408 = vld [vmem:[%s1 + $0x40] sm:$0xff]
      %v409 = vld [vmem:[%s1 + $0x48] sm:$0xff]
      %v410 = vld [vmem:[%s1 + $0x50] sm:$0xff]
      %v411 = vld [vmem:[%s1 + $0x58] sm:$0xff]
      %v412 = vld [vmem:[%s1 + $0x60] sm:$0xff]
      %v413 = vld [vmem:[%s1 + $0x68] sm:$0xff]
      %v414 = vld [vmem:[%s1 + $0x70] sm:$0xff]
      %v415 = vld [vmem:[%s1 + $0x78] sm:$0xff]
      %v416 = vld [vmem:[%s1 + $0x80] sm:$0xff]
      %v417 = vld [vmem:[%s1 + $0x88] sm:$0xff]
      %v418 = vld [vmem:[%s1 + $0x90] sm:$0xff]
      %v419 = vld [vmem:[%s1 + $0x98] sm:$0xff]
      %v420 = vld [vmem:[%s1 + $0xa0] sm:$0xff]
      %v421 = vld [vmem:[%s1 + $0xa8] sm:$0xff]
      %v422 = vld [vmem:[%s1 + $0xb0] sm:$0xff]
      %v423 = vld [vmem:[%s1 + $0xb8] sm:$0xff]
      %v424 = vld [vmem:[%s1 + $0xc0] sm:$0xff]
      %v425 = vmul.f32 %v375, %v400
      %v426 = vmul.f32 %v376, %v401
      %v427 = vmul.f32 %v377, %v402
      %v428 = vmul.f32 %v378, %v403
      %v429 = vmul.f32 %v379, %v404
      %v430 = vmul.f32 %v380, %v405
      %v431 = vmul.f32 %v381, %v406
      %v432 = vmul.f32 %v382, %v407
      %v433 = vmul.f32 %v383, %v408
      %v434 = vmul.f32 %v384, %v409
      %v435 = vmul.f32 %v385, %v410
      %v436 = vmul.f32 %v386, %v411
      %v437 = vmul.f32 %v387, %v412
      %v438 = vmul.f32 %v388, %v413
      %v439 = vmul.f32 %v389, %v414
      %v440 = vmul.f32 %v390, %v415
      %v441 = vmul.f32 %v391, %v416
      %v442 = vmul.f32 %v392, %v417
      %v443 = vmul.f32 %v393, %v418
      %v444 = vmul.f32 %v394, %v419
      %v445 = vmul.f32 %v395, %v420
      %v446 = vmul.f32 %v396, %v421
      %v447 = vmul.f32 %v397, %v422
      %v448 = vmul.f32 %v398, %v423
      %v449 = vmul.f32 %v399, %v424
      %v450 = vld [vmem:[%s2] sm:$0xf]
      %vm451 = vcmask 31744
      %v453 = vsel %vm451, %v425, 0
      %v456 = vsel %vm451, %v426, 0
      %v459 = vsel %vm451, %v427, 0
      %v462 = vsel %vm451, %v428, 0
      %v465 = vsel %vm451, %v429, 0
      %v468 = vsel %vm451, %v430, 0
      %v471 = vsel %vm451, %v431, 0
      %v474 = vsel %vm451, %v432, 0
      %v477 = vsel %vm451, %v433, 0
      %v480 = vsel %vm451, %v434, 0
      %v483 = vsel %vm451, %v435, 0
      %v486 = vsel %vm451, %v436, 0
      %v489 = vsel %vm451, %v437, 0
      %v492 = vsel %vm451, %v438, 0
      %v495 = vsel %vm451, %v439, 0
      %v498 = vsel %vm451, %v440, 0
      %v501 = vsel %vm451, %v441, 0
      %v504 = vsel %vm451, %v442, 0
      %v507 = vsel %vm451, %v443, 0
      %v510 = vsel %vm451, %v444, 0
      %v513 = vsel %vm451, %v445, 0
      %v516 = vsel %vm451, %v446, 0
      %v519 = vsel %vm451, %v447, 0
      %v522 = vsel %vm451, %v448, 0
      %v525 = vsel %vm451, %v449, 0
      %vm527 = vcmask 1043456
      %v529 = vsel %vm527, %v450, 0
      %531 = vmatpush.msra.mxu0 0.0
      %532 = vmatpush.msra.mxu0 0.0
      %533 = vmatpush.msra.mxu0 0.0
      %534 = vmatpush.msra.mxu0 0.0
      %535 = vmatpush.msra.mxu0 0.0
      %536 = vmatpush.msra.mxu0 0.0
      %537 = vmatpush.msra.mxu0 0.0
      %538 = vmatpush.msra.mxu0 0.0
      %539 = vmatpush.msra.mxu0 0.0
      %540 = vmatpush.msra.mxu0 0.0
      %541 = vmatpush.msra.mxu0 0.0
      %542 = vmatpush.msra.mxu0 0.0
      %543 = vmatpush.msra.mxu0 0.0
      %544 = vmatpush.msra.mxu0 0.0
      %545 = vmatpush.msra.mxu0 0.0
      %546 = vmatpush.msra.mxu0 %v529
      %547 = vmatmul.f32.gmra.mxu0 %v453
      %v548 = vpop.f32.mrf.mxu0
      %v549 = vadd.f32 0.0, %v548
      %550 = vmatmul.f32.gmra.mxu0 %v456
      %v551 = vpop.f32.mrf.mxu0
      %v552 = vadd.f32 0.0, %v551
      %553 = vmatmul.f32.gmra.mxu0 %v459
      %v554 = vpop.f32.mrf.mxu0
      %v555 = vadd.f32 0.0, %v554
      %556 = vmatmul.f32.gmra.mxu0 %v462
      %v557 = vpop.f32.mrf.mxu0
      %v558 = vadd.f32 0.0, %v557
      %559 = vmatmul.f32.gmra.mxu0 %v465
      %v560 = vpop.f32.mrf.mxu0
      %v561 = vadd.f32 0.0, %v560
      %562 = vmatmul.f32.gmra.mxu0 %v468
      %v563 = vpop.f32.mrf.mxu0
      %v564 = vadd.f32 0.0, %v563
      %565 = vmatmul.f32.gmra.mxu0 %v471
      %v566 = vpop.f32.mrf.mxu0
      %v567 = vadd.f32 0.0, %v566
      %568 = vmatmul.f32.gmra.mxu0 %v474
      %v569 = vpop.f32.mrf.mxu0
      %v570 = vadd.f32 0.0, %v569
      %571 = vmatmul.f32.gmra.mxu0 %v477
      %v572 = vpop.f32.mrf.mxu0
      %v573 = vadd.f32 0.0, %v572
      %574 = vmatmul.f32.gmra.mxu0 %v480
      %v575 = vpop.f32.mrf.mxu0
      %v576 = vadd.f32 0.0, %v575
      %577 = vmatmul.f32.gmra.mxu0 %v483
      %v578 = vpop.f32.mrf.mxu0
      %v579 = vadd.f32 0.0, %v578
      %580 = vmatmul.f32.gmra.mxu0 %v486
      %v581 = vpop.f32.mrf.mxu0
      %v582 = vadd.f32 0.0, %v581
      %583 = vmatmul.f32.gmra.mxu0 %v489
      %v584 = vpop.f32.mrf.mxu0
      %v585 = vadd.f32 0.0, %v584
      %586 = vmatmul.f32.gmra.mxu0 %v492
      %v587 = vpop.f32.mrf.mxu0
      %v588 = vadd.f32 0.0, %v587
      %589 = vmatmul.f32.gmra.mxu0 %v495
      %v590 = vpop.f32.mrf.mxu0
      %v591 = vadd.f32 0.0, %v590
      %592 = vmatmul.f32.gmra.mxu0 %v498
      %v593 = vpop.f32.mrf.mxu0
      %v594 = vadd.f32 0.0, %v593
      %595 = vmatmul.f32.gmra.mxu0 %v501
      %v596 = vpop.f32.mrf.mxu0
      %v597 = vadd.f32 0.0, %v596
      %598 = vmatmul.f32.gmra.mxu0 %v504
      %v599 = vpop.f32.mrf.mxu0
      %v600 = vadd.f32 0.0, %v599
      %601 = vmatmul.f32.gmra.mxu0 %v507
      %v602 = vpop.f32.mrf.mxu0
      %v603 = vadd.f32 0.0, %v602
      %604 = vmatmul.f32.gmra.mxu0 %v510
      %v605 = vpop.f32.mrf.mxu0
      %v606 = vadd.f32 0.0, %v605
      %607 = vmatmul.f32.gmra.mxu0 %v513
      %v608 = vpop.f32.mrf.mxu0
      %v609 = vadd.f32 0.0, %v608
      %610 = vmatmul.f32.gmra.mxu0 %v516
      %v611 = vpop.f32.mrf.mxu0
      %v612 = vadd.f32 0.0, %v611
      %613 = vmatmul.f32.gmra.mxu0 %v519
      %v614 = vpop.f32.mrf.mxu0
      %v615 = vadd.f32 0.0, %v614
      %616 = vmatmul.f32.gmra.mxu0 %v522
      %v617 = vpop.f32.mrf.mxu0
      %v618 = vadd.f32 0.0, %v617
      %619 = vmatmul.f32.gmra.mxu0 %v525
      %v620 = vpop.f32.mrf.mxu0
      %v621 = vadd.f32 0.0, %v620
      %622 = vdwg.mxu0
      %v623 = vsel %vm318, %v621, %v549
      %v624 = vsel %vm318, %v549, %v552
      %v625 = vsel %vm318, %v552, %v555
      %v626 = vsel %vm318, %v555, %v558
      %v627 = vsel %vm318, %v558, %v561
      %v628 = vsel %vm318, %v561, %v564
      %v629 = vsel %vm318, %v564, %v567
      %v630 = vsel %vm318, %v567, %v570
      %v631 = vsel %vm318, %v570, %v573
      %v632 = vsel %vm318, %v573, %v576
      %v633 = vsel %vm318, %v576, %v579
      %v634 = vsel %vm318, %v579, %v582
      %v635 = vsel %vm318, %v582, %v585
      %v636 = vsel %vm318, %v585, %v588
      %v637 = vsel %vm318, %v588, %v591
      %v638 = vsel %vm318, %v591, %v594
      %v639 = vsel %vm318, %v594, %v597
      %v640 = vsel %vm318, %v597, %v600
      %v641 = vsel %vm318, %v600, %v603
      %v642 = vsel %vm318, %v603, %v606
      %v643 = vsel %vm318, %v606, %v609
      %v644 = vsel %vm318, %v609, %v612
      %v645 = vsel %vm318, %v612, %v615
      %v646 = vsel %vm318, %v615, %v618
      %v647 = vsel %vm318, %v618, %v621
      %v648 = vsel %vm346, %v618, %v623
      %v649 = vsel %vm346, %v621, %v624
      %v650 = vsel %vm346, %v549, %v625
      %v651 = vsel %vm346, %v552, %v626
      %v652 = vsel %vm346, %v555, %v627
      %v653 = vsel %vm346, %v558, %v628
      %v654 = vsel %vm346, %v561, %v629
      %v655 = vsel %vm346, %v564, %v630
      %v656 = vsel %vm346, %v567, %v631
      %v657 = vsel %vm346, %v570, %v632
      %v658 = vsel %vm346, %v573, %v633
      %v659 = vsel %vm346, %v576, %v634
      %v660 = vsel %vm346, %v579, %v635
      %v661 = vsel %vm346, %v582, %v636
      %v662 = vsel %vm346, %v585, %v637
      %v663 = vsel %vm346, %v588, %v638
      %v664 = vsel %vm346, %v591, %v639
      %v665 = vsel %vm346, %v594, %v640
      %v666 = vsel %vm346, %v597, %v641
      %v667 = vsel %vm346, %v600, %v642
      %v668 = vsel %vm346, %v603, %v643
      %v669 = vsel %vm346, %v606, %v644
      %v670 = vsel %vm346, %v609, %v645
      %v671 = vsel %vm346, %v612, %v646
      %v672 = vsel %vm346, %v615, %v647
      %v673 = vsel %vm374, %v615, %v648
      %v674 = vsel %vm374, %v618, %v649
      %v675 = vsel %vm374, %v621, %v650
      %v676 = vsel %vm374, %v549, %v651
      %v677 = vsel %vm374, %v552, %v652
      %v678 = vsel %vm374, %v555, %v653
      %v679 = vsel %vm374, %v558, %v654
      %v680 = vsel %vm374, %v561, %v655
      %v681 = vsel %vm374, %v564, %v656
      %v682 = vsel %vm374, %v567, %v657
      %v683 = vsel %vm374, %v570, %v658
      %v684 = vsel %vm374, %v573, %v659
      %v685 = vsel %vm374, %v576, %v660
      %v686 = vsel %vm374, %v579, %v661
      %v687 = vsel %vm374, %v582, %v662
      %v688 = vsel %vm374, %v585, %v663
      %v689 = vsel %vm374, %v588, %v664
      %v690 = vsel %vm374, %v591, %v665
      %v691 = vsel %vm374, %v594, %v666
      %v692 = vsel %vm374, %v597, %v667
      %v693 = vsel %vm374, %v600, %v668
      %v694 = vsel %vm374, %v603, %v669
      %v695 = vsel %vm374, %v606, %v670
      %v696 = vsel %vm374, %v609, %v671
      %v697 = vsel %vm374, %v612, %v672
      %vm698 = vcmp.eq.s32.totalorder %v315, 4
      %v699 = vsel %vm698, 1, 0
      %vm700 = vcmp.eq.s32.totalorder %v699, 1
      %v701 = vsel %vm700, %v612, %v673
      %v702 = vsel %vm700, %v615, %v674
      %v703 = vsel %vm700, %v618, %v675
      %v704 = vsel %vm700, %v621, %v676
      %v705 = vsel %vm700, %v549, %v677
      %v706 = vsel %vm700, %v552, %v678
      %v707 = vsel %vm700, %v555, %v679
      %v708 = vsel %vm700, %v558, %v680
      %v709 = vsel %vm700, %v561, %v681
      %v710 = vsel %vm700, %v564, %v682
      %v711 = vsel %vm700, %v567, %v683
      %v712 = vsel %vm700, %v570, %v684
      %v713 = vsel %vm700, %v573, %v685
      %v714 = vsel %vm700, %v576, %v686
      %v715 = vsel %vm700, %v579, %v687
      %v716 = vsel %vm700, %v582, %v688
      %v717 = vsel %vm700, %v585, %v689
      %v718 = vsel %vm700, %v588, %v690
      %v719 = vsel %vm700, %v591, %v691
      %v720 = vsel %vm700, %v594, %v692
      %v721 = vsel %vm700, %v597, %v693
      %v722 = vsel %vm700, %v600, %v694
      %v723 = vsel %vm700, %v603, %v695
      %v724 = vsel %vm700, %v606, %v696
      %v725 = vsel %vm700, %v609, %v697
      %vm726 = vcmp.eq.s32.totalorder %v315, 5
      %v727 = vsel %vm726, 1, 0
      %vm728 = vcmp.eq.s32.totalorder %v727, 1
      %v729 = vsel %vm728, %v609, %v701
      %v730 = vsel %vm728, %v612, %v702
      %v731 = vsel %vm728, %v615, %v703
      %v732 = vsel %vm728, %v618, %v704
      %v733 = vsel %vm728, %v621, %v705
      %v734 = vsel %vm728, %v549, %v706
      %v735 = vsel %vm728, %v552, %v707
      %v736 = vsel %vm728, %v555, %v708
      %v737 = vsel %vm728, %v558, %v709
      %v738 = vsel %vm728, %v561, %v710
      %v739 = vsel %vm728, %v564, %v711
      %v740 = vsel %vm728, %v567, %v712
      %v741 = vsel %vm728, %v570, %v713
      %v742 = vsel %vm728, %v573, %v714
      %v743 = vsel %vm728, %v576, %v715
      %v744 = vsel %vm728, %v579, %v716
      %v745 = vsel %vm728, %v582, %v717
      %v746 = vsel %vm728, %v585, %v718
      %v747 = vsel %vm728, %v588, %v719
      %v748 = vsel %vm728, %v591, %v720
      %v749 = vsel %vm728, %v594, %v721
      %v750 = vsel %vm728, %v597, %v722
      %v751 = vsel %vm728, %v600, %v723
      %v752 = vsel %vm728, %v603, %v724
      %v753 = vsel %vm728, %v606, %v725
      %vm754 = vcmp.eq.s32.totalorder %v315, 6
      %v755 = vsel %vm754, 1, 0
      %vm756 = vcmp.eq.s32.totalorder %v755, 1
      %v757 = vsel %vm756, %v606, %v729
      %v758 = vsel %vm756, %v609, %v730
      %v759 = vsel %vm756, %v612, %v731
      %v760 = vsel %vm756, %v615, %v732
      %v761 = vsel %vm756, %v618, %v733
      %v762 = vsel %vm756, %v621, %v734
      %v763 = vsel %vm756, %v549, %v735
      %v764 = vsel %vm756, %v552, %v736
      %v765 = vsel %vm756, %v555, %v737
      %v766 = vsel %vm756, %v558, %v738
      %v767 = vsel %vm756, %v561, %v739
      %v768 = vsel %vm756, %v564, %v740
      %v769 = vsel %vm756, %v567, %v741
      %v770 = vsel %vm756, %v570, %v742
      %v771 = vsel %vm756, %v573, %v743
      %v772 = vsel %vm756, %v576, %v744
      %v773 = vsel %vm756, %v579, %v745
      %v774 = vsel %vm756, %v582, %v746
      %v775 = vsel %vm756, %v585, %v747
      %v776 = vsel %vm756, %v588, %v748
      %v777 = vsel %vm756, %v591, %v749
      %v778 = vsel %vm756, %v594, %v750
      %v779 = vsel %vm756, %v597, %v751
      %v780 = vsel %vm756, %v600, %v752
      %v781 = vsel %vm756, %v603, %v753
      %vm782 = vcmp.eq.s32.totalorder %v315, 7
      %v783 = vsel %vm782, 1, 0
      %vm784 = vcmp.eq.s32.totalorder %v783, 1
      %v785 = vsel %vm784, %v603, %v757
      %v786 = vsel %vm784, %v606, %v758
      %v787 = vsel %vm784, %v609, %v759
      %v788 = vsel %vm784, %v612, %v760
      %v789 = vsel %vm784, %v615, %v761
      %v790 = vsel %vm784, %v618, %v762
      %v791 = vsel %vm784, %v621, %v763
      %v792 = vsel %vm784, %v549, %v764
      %v793 = vsel %vm784, %v552, %v765
      %v794 = vsel %vm784, %v555, %v766
      %v795 = vsel %vm784, %v558, %v767
      %v796 = vsel %vm784, %v561, %v768
      %v797 = vsel %vm784, %v564, %v769
      %v798 = vsel %vm784, %v567, %v770
      %v799 = vsel %vm784, %v570, %v771
      %v800 = vsel %vm784, %v573, %v772
      %v801 = vsel %vm784, %v576, %v773
      %v802 = vsel %vm784, %v579, %v774
      %v803 = vsel %vm784, %v582, %v775
      %v804 = vsel %vm784, %v585, %v776
      %v805 = vsel %vm784, %v588, %v777
      %v806 = vsel %vm784, %v591, %v778
      %v807 = vsel %vm784, %v594, %v779
      %v808 = vsel %vm784, %v597, %v780
      %v809 = vsel %vm784, %v600, %v781
      %v810 = vld [vmem:[%s3] sm:$0xf]
      %v812 = vsel %vm451, %v255, 0
      %v815 = vsel %vm451, %v256, 0
      %v818 = vsel %vm451, %v257, 0
      %v821 = vsel %vm451, %v258, 0
      %v824 = vsel %vm451, %v259, 0
      %v827 = vsel %vm451, %v260, 0
      %v830 = vsel %vm451, %v261, 0
      %v833 = vsel %vm451, %v262, 0
      %v836 = vsel %vm451, %v263, 0
      %v839 = vsel %vm451, %v264, 0
      %v842 = vsel %vm451, %v265, 0
      %v845 = vsel %vm451, %v266, 0
      %v848 = vsel %vm451, %v267, 0
      %v851 = vsel %vm451, %v268, 0
      %v854 = vsel %vm451, %v269, 0
      %v857 = vsel %vm451, %v270, 0
      %v860 = vsel %vm451, %v271, 0
      %v863 = vsel %vm451, %v272, 0
      %v866 = vsel %vm451, %v273, 0
      %v869 = vsel %vm451, %v274, 0
      %v872 = vsel %vm451, %v275, 0
      %v875 = vsel %vm451, %v276, 0
      %v878 = vsel %vm451, %v277, 0
      %v881 = vsel %vm451, %v278, 0
      %v884 = vsel %vm451, %v279, 0
      %v887 = vsel %vm527, %v810, 0
      %889 = vmatpush.msra.mxu0 0.0
      %890 = vmatpush.msra.mxu0 0.0
      %891 = vmatpush.msra.mxu0 0.0
      %892 = vmatpush.msra.mxu0 0.0
      %893 = vmatpush.msra.mxu0 0.0
      %894 = vmatpush.msra.mxu0 0.0
      %895 = vmatpush.msra.mxu0 0.0
      %896 = vmatpush.msra.mxu0 0.0
      %897 = vmatpush.msra.mxu0 0.0
      %898 = vmatpush.msra.mxu0 0.0
      %899 = vmatpush.msra.mxu0 0.0
      %900 = vmatpush.msra.mxu0 0.0
      %901 = vmatpush.msra.mxu0 0.0
      %902 = vmatpush.msra.mxu0 0.0
      %903 = vmatpush.msra.mxu0 0.0
      %904 = vmatpush.msra.mxu0 %v887
      %905 = vmatmul.f32.gmra.mxu0 %v812
      %v906 = vpop.f32.mrf.mxu0
      %v907 = vadd.f32 0.0, %v906
      %908 = vmatmul.f32.gmra.mxu0 %v815
      %v909 = vpop.f32.mrf.mxu0
      %v910 = vadd.f32 0.0, %v909
      %911 = vmatmul.f32.gmra.mxu0 %v818
      %v912 = vpop.f32.mrf.mxu0
      %v913 = vadd.f32 0.0, %v912
      %914 = vmatmul.f32.gmra.mxu0 %v821
      %v915 = vpop.f32.mrf.mxu0
      %v916 = vadd.f32 0.0, %v915
      %917 = vmatmul.f32.gmra.mxu0 %v824
      %v918 = vpop.f32.mrf.mxu0
      %v919 = vadd.f32 0.0, %v918
      %920 = vmatmul.f32.gmra.mxu0 %v827
      %v921 = vpop.f32.mrf.mxu0
      %v922 = vadd.f32 0.0, %v921
      %923 = vmatmul.f32.gmra.mxu0 %v830
      %v924 = vpop.f32.mrf.mxu0
      %v925 = vadd.f32 0.0, %v924
      %926 = vmatmul.f32.gmra.mxu0 %v833
      %v927 = vpop.f32.mrf.mxu0
      %v928 = vadd.f32 0.0, %v927
      %929 = vmatmul.f32.gmra.mxu0 %v836
      %v930 = vpop.f32.mrf.mxu0
      %v931 = vadd.f32 0.0, %v930
      %932 = vmatmul.f32.gmra.mxu0 %v839
      %v933 = vpop.f32.mrf.mxu0
      %v934 = vadd.f32 0.0, %v933
      %935 = vmatmul.f32.gmra.mxu0 %v842
      %v936 = vpop.f32.mrf.mxu0
      %v937 = vadd.f32 0.0, %v936
      %938 = vmatmul.f32.gmra.mxu0 %v845
      %v939 = vpop.f32.mrf.mxu0
      %v940 = vadd.f32 0.0, %v939
      %941 = vmatmul.f32.gmra.mxu0 %v848
      %v942 = vpop.f32.mrf.mxu0
      %v943 = vadd.f32 0.0, %v942
      %944 = vmatmul.f32.gmra.mxu0 %v851
      %v945 = vpop.f32.mrf.mxu0
      %v946 = vadd.f32 0.0, %v945
      %947 = vmatmul.f32.gmra.mxu0 %v854
      %v948 = vpop.f32.mrf.mxu0
      %v949 = vadd.f32 0.0, %v948
      %950 = vmatmul.f32.gmra.mxu0 %v857
      %v951 = vpop.f32.mrf.mxu0
      %v952 = vadd.f32 0.0, %v951
      %953 = vmatmul.f32.gmra.mxu0 %v860
      %v954 = vpop.f32.mrf.mxu0
      %v955 = vadd.f32 0.0, %v954
      %956 = vmatmul.f32.gmra.mxu0 %v863
      %v957 = vpop.f32.mrf.mxu0
      %v958 = vadd.f32 0.0, %v957
      %959 = vmatmul.f32.gmra.mxu0 %v866
      %v960 = vpop.f32.mrf.mxu0
      %v961 = vadd.f32 0.0, %v960
      %962 = vmatmul.f32.gmra.mxu0 %v869
      %v963 = vpop.f32.mrf.mxu0
      %v964 = vadd.f32 0.0, %v963
      %965 = vmatmul.f32.gmra.mxu0 %v872
      %v966 = vpop.f32.mrf.mxu0
      %v967 = vadd.f32 0.0, %v966
      %968 = vmatmul.f32.gmra.mxu0 %v875
      %v969 = vpop.f32.mrf.mxu0
      %v970 = vadd.f32 0.0, %v969
      %971 = vmatmul.f32.gmra.mxu0 %v878
      %v972 = vpop.f32.mrf.mxu0
      %v973 = vadd.f32 0.0, %v972
      %974 = vmatmul.f32.gmra.mxu0 %v881
      %v975 = vpop.f32.mrf.mxu0
      %v976 = vadd.f32 0.0, %v975
      %977 = vmatmul.f32.gmra.mxu0 %v884
      %v978 = vpop.f32.mrf.mxu0
      %v979 = vadd.f32 0.0, %v978
      %980 = vdwg.mxu0
      %v981 = vld [vmem:[%s4] sm:$0xff]
      %v982 = vld [vmem:[%s4 + $0x8] sm:$0xff]
      %v983 = vld [vmem:[%s4 + $0x10] sm:$0xff]
      %v984 = vld [vmem:[%s4 + $0x18] sm:$0xff]
      %v985 = vld [vmem:[%s4 + $0x20] sm:$0xff]
      %v986 = vld [vmem:[%s4 + $0x28] sm:$0xff]
      %v987 = vld [vmem:[%s4 + $0x30] sm:$0xff]
      %v988 = vld [vmem:[%s4 + $0x38] sm:$0xff]
      %v989 = vld [vmem:[%s4 + $0x40] sm:$0xff]
      %v990 = vld [vmem:[%s4 + $0x48] sm:$0xff]
      %v991 = vld [vmem:[%s4 + $0x50] sm:$0xff]
      %v992 = vld [vmem:[%s4 + $0x58] sm:$0xff]
      %v993 = vld [vmem:[%s4 + $0x60] sm:$0xff]
      %v994 = vld [vmem:[%s4 + $0x68] sm:$0xff]
      %v995 = vld [vmem:[%s4 + $0x70] sm:$0xff]
      %v996 = vld [vmem:[%s4 + $0x78] sm:$0xff]
      %v997 = vld [vmem:[%s4 + $0x80] sm:$0xff]
      %v998 = vld [vmem:[%s4 + $0x88] sm:$0xff]
      %v999 = vld [vmem:[%s4 + $0x90] sm:$0xff]
      %v1000 = vld [vmem:[%s4 + $0x98] sm:$0xff]
      %v1001 = vld [vmem:[%s4 + $0xa0] sm:$0xff]
      %v1002 = vld [vmem:[%s4 + $0xa8] sm:$0xff]
      %v1003 = vld [vmem:[%s4 + $0xb0] sm:$0xff]
      %v1004 = vld [vmem:[%s4 + $0xb8] sm:$0xff]
      %v1005 = vld [vmem:[%s4 + $0xc0] sm:$0xff]
      %v1006 = vmul.f32 %v785, %v981
      %v1007 = vmul.f32 %v786, %v982
      %v1008 = vmul.f32 %v787, %v983
      %v1009 = vmul.f32 %v788, %v984
      %v1010 = vmul.f32 %v789, %v985
      %v1011 = vmul.f32 %v790, %v986
      %v1012 = vmul.f32 %v791, %v987
      %v1013 = vmul.f32 %v792, %v988
      %v1014 = vmul.f32 %v793, %v989
      %v1015 = vmul.f32 %v794, %v990
      %v1016 = vmul.f32 %v795, %v991
      %v1017 = vmul.f32 %v796, %v992
      %v1018 = vmul.f32 %v797, %v993
      %v1019 = vmul.f32 %v798, %v994
      %v1020 = vmul.f32 %v799, %v995
      %v1021 = vmul.f32 %v800, %v996
      %v1022 = vmul.f32 %v801, %v997
      %v1023 = vmul.f32 %v802, %v998
      %v1024 = vmul.f32 %v803, %v999
      %v1025 = vmul.f32 %v804, %v1000
      %v1026 = vmul.f32 %v805, %v1001
      %v1027 = vmul.f32 %v806, %v1002
      %v1028 = vmul.f32 %v807, %v1003
      %v1029 = vmul.f32 %v808, %v1004
      %v1030 = vmul.f32 %v809, %v1005
      %v1031 = vadd.f32 %v1006, %v907
      %v1032 = vadd.f32 %v1007, %v910
      %v1033 = vadd.f32 %v1008, %v913
      %v1034 = vadd.f32 %v1009, %v916
      %v1035 = vadd.f32 %v1010, %v919
      %v1036 = vadd.f32 %v1011, %v922
      %v1037 = vadd.f32 %v1012, %v925
      %v1038 = vadd.f32 %v1013, %v928
      %v1039 = vadd.f32 %v1014, %v931
      %v1040 = vadd.f32 %v1015, %v934
      %v1041 = vadd.f32 %v1016, %v937
      %v1042 = vadd.f32 %v1017, %v940
      %v1043 = vadd.f32 %v1018, %v943
      %v1044 = vadd.f32 %v1019, %v946
      %v1045 = vadd.f32 %v1020, %v949
      %v1046 = vadd.f32 %v1021, %v952
      %v1047 = vadd.f32 %v1022, %v955
      %v1048 = vadd.f32 %v1023, %v958
      %v1049 = vadd.f32 %v1024, %v961
      %v1050 = vadd.f32 %v1025, %v964
      %v1051 = vadd.f32 %v1026, %v967
      %v1052 = vadd.f32 %v1027, %v970
      %v1053 = vadd.f32 %v1028, %v973
      %v1054 = vadd.f32 %v1029, %v976
      %v1055 = vadd.f32 %v1030, %v979
      %v1056 = vld [vmem:[%s5] sm:$0xff]
      %v1057 = vld [vmem:[%s5 + $0x8] sm:$0xff]
      %v1058 = vld [vmem:[%s5 + $0x10] sm:$0xff]
      %v1059 = vld [vmem:[%s5 + $0x18] sm:$0xff]
      %v1060 = vld [vmem:[%s5 + $0x20] sm:$0xff]
      %v1061 = vld [vmem:[%s5 + $0x28] sm:$0xff]
      %v1062 = vld [vmem:[%s5 + $0x30] sm:$0xff]
      %v1063 = vld [vmem:[%s5 + $0x38] sm:$0xff]
      %v1064 = vld [vmem:[%s5 + $0x40] sm:$0xff]
      %v1065 = vld [vmem:[%s5 + $0x48] sm:$0xff]
      %v1066 = vld [vmem:[%s5 + $0x50] sm:$0xff]
      %v1067 = vld [vmem:[%s5 + $0x58] sm:$0xff]
      %v1068 = vld [vmem:[%s5 + $0x60] sm:$0xff]
      %v1069 = vld [vmem:[%s5 + $0x68] sm:$0xff]
      %v1070 = vld [vmem:[%s5 + $0x70] sm:$0xff]
      %v1071 = vld [vmem:[%s5 + $0x78] sm:$0xff]
      %v1072 = vld [vmem:[%s5 + $0x80] sm:$0xff]
      %v1073 = vld [vmem:[%s5 + $0x88] sm:$0xff]
      %v1074 = vld [vmem:[%s5 + $0x90] sm:$0xff]
      %v1075 = vld [vmem:[%s5 + $0x98] sm:$0xff]
      %v1076 = vld [vmem:[%s5 + $0xa0] sm:$0xff]
      %v1077 = vld [vmem:[%s5 + $0xa8] sm:$0xff]
      %v1078 = vld [vmem:[%s5 + $0xb0] sm:$0xff]
      %v1079 = vld [vmem:[%s5 + $0xb8] sm:$0xff]
      %v1080 = vld [vmem:[%s5 + $0xc0] sm:$0xff]
      %v1081 = vadd.f32 %v1031, %v1056
      %v1082 = vadd.f32 %v1032, %v1057
      %v1083 = vadd.f32 %v1033, %v1058
      %v1084 = vadd.f32 %v1034, %v1059
      %v1085 = vadd.f32 %v1035, %v1060
      %v1086 = vadd.f32 %v1036, %v1061
      %v1087 = vadd.f32 %v1037, %v1062
      %v1088 = vadd.f32 %v1038, %v1063
      %v1089 = vadd.f32 %v1039, %v1064
      %v1090 = vadd.f32 %v1040, %v1065
      %v1091 = vadd.f32 %v1041, %v1066
      %v1092 = vadd.f32 %v1042, %v1067
      %v1093 = vadd.f32 %v1043, %v1068
      %v1094 = vadd.f32 %v1044, %v1069
      %v1095 = vadd.f32 %v1045, %v1070
      %v1096 = vadd.f32 %v1046, %v1071
      %v1097 = vadd.f32 %v1047, %v1072
      %v1098 = vadd.f32 %v1048, %v1073
      %v1099 = vadd.f32 %v1049, %v1074
      %v1100 = vadd.f32 %v1050, %v1075
      %v1101 = vadd.f32 %v1051, %v1076
      %v1102 = vadd.f32 %v1052, %v1077
      %v1103 = vadd.f32 %v1053, %v1078
      %v1104 = vadd.f32 %v1054, %v1079
      %v1105 = vadd.f32 %v1055, %v1080
      %v1106 = vmax.f32 %v1081, 0.0
      %v1107 = vmax.f32 %v1082, 0.0
      %v1108 = vmax.f32 %v1083, 0.0
      %v1109 = vmax.f32 %v1084, 0.0
      %v1110 = vmax.f32 %v1085, 0.0
      %v1111 = vmax.f32 %v1086, 0.0
      %v1112 = vmax.f32 %v1087, 0.0
      %v1113 = vmax.f32 %v1088, 0.0
      %v1114 = vmax.f32 %v1089, 0.0
      %v1115 = vmax.f32 %v1090, 0.0
      %v1116 = vmax.f32 %v1091, 0.0
      %v1117 = vmax.f32 %v1092, 0.0
      %v1118 = vmax.f32 %v1093, 0.0
      %v1119 = vmax.f32 %v1094, 0.0
      %v1120 = vmax.f32 %v1095, 0.0
      %v1121 = vmax.f32 %v1096, 0.0
      %v1122 = vmax.f32 %v1097, 0.0
      %v1123 = vmax.f32 %v1098, 0.0
      %v1124 = vmax.f32 %v1099, 0.0
      %v1125 = vmax.f32 %v1100, 0.0
      %v1126 = vmax.f32 %v1101, 0.0
      %v1127 = vmax.f32 %v1102, 0.0
      %v1128 = vmax.f32 %v1103, 0.0
      %v1129 = vmax.f32 %v1104, 0.0
      %v1130 = vmax.f32 %v1105, 0.0
      %vm1131 = vcmask 64512
      %1132 = vst.msk [vmem:[%s253] sm:$0xff] %vm1131, %v1106
      %1133 = vst.msk [vmem:[%s253 + $0x8] sm:$0xff] %vm1131, %v1107
      %1134 = vst.msk [vmem:[%s253 + $0x10] sm:$0xff] %vm1131, %v1108
      %1135 = vst.msk [vmem:[%s253 + $0x18] sm:$0xff] %vm1131, %v1109
      %1136 = vst.msk [vmem:[%s253 + $0x20] sm:$0xff] %vm1131, %v1110
      %1137 = vst.msk [vmem:[%s253 + $0x28] sm:$0xff] %vm1131, %v1111
      %1138 = vst.msk [vmem:[%s253 + $0x30] sm:$0xff] %vm1131, %v1112
      %1139 = vst.msk [vmem:[%s253 + $0x38] sm:$0xff] %vm1131, %v1113
      %1140 = vst.msk [vmem:[%s253 + $0x40] sm:$0xff] %vm1131, %v1114
      %1141 = vst.msk [vmem:[%s253 + $0x48] sm:$0xff] %vm1131, %v1115
      %1142 = vst.msk [vmem:[%s253 + $0x50] sm:$0xff] %vm1131, %v1116
      %1143 = vst.msk [vmem:[%s253 + $0x58] sm:$0xff] %vm1131, %v1117
      %1144 = vst.msk [vmem:[%s253 + $0x60] sm:$0xff] %vm1131, %v1118
      %1145 = vst.msk [vmem:[%s253 + $0x68] sm:$0xff] %vm1131, %v1119
      %1146 = vst.msk [vmem:[%s253 + $0x70] sm:$0xff] %vm1131, %v1120
      %1147 = vst.msk [vmem:[%s253 + $0x78] sm:$0xff] %vm1131, %v1121
      %1148 = vst.msk [vmem:[%s253 + $0x80] sm:$0xff] %vm1131, %v1122
      %1149 = vst.msk [vmem:[%s253 + $0x88] sm:$0xff] %vm1131, %v1123
      %1150 = vst.msk [vmem:[%s253 + $0x90] sm:$0xff] %vm1131, %v1124
      %1151 = vst.msk [vmem:[%s253 + $0x98] sm:$0xff] %vm1131, %v1125
      %1152 = vst.msk [vmem:[%s253 + $0xa0] sm:$0xff] %vm1131, %v1126
      %1153 = vst.msk [vmem:[%s253 + $0xa8] sm:$0xff] %vm1131, %v1127
      %1154 = vst.msk [vmem:[%s253 + $0xb0] sm:$0xff] %vm1131, %v1128
      %1155 = vst.msk [vmem:[%s253 + $0xb8] sm:$0xff] %vm1131, %v1129
      %1156 = vst.msk [vmem:[%s253 + $0xc0] sm:$0xff] %vm1131, %v1130
      %s1157 = smul.u32 25, %s17
      %p1158 = scmp.lt.s32.totalorder %s1157, 49
      %s1159 = scalar_select %p1158, %s1157, 49
      %s1160 = smul.addr %s1159, 8
      %s1161 = scalar_lea.vmem %s6, %s1160
      // Predicated region
      $region45: #{_lambda_.1} parent=43 // pred_check
        %p1162 = pneg %p166
      $region46: #{_lambda_.1} parent=43 // pred_check_branch
        %1164 = sbr.rel (%p1162) target = $region48
      $region47: #{_lambda_.1} parent=43 // pred_region
        %s1165 = smul.u32 25, %s17
      $region48: #{_lambda_.1} parent=43 // pred_fallthru
        _
    $region44: #{_lambda_.1} parent=5 // pred_fallthru
      _
    %p1166 = scmp.le.s32.totalorder 2, %s12
    // Predicated region
    $region49: #{_lambda_.1} parent=5 // pred_check
      %p1167 = pneg %p1166
    $region50: #{_lambda_.1} parent=5 // pred_check_branch
      %1169 = sbr.rel (%p1167) target = $region52
    $region51: #{_lambda_.1} parent=5 // pred_region
      %s1170 = ssub.s32 %s12, 2
      // Predicated region
      $region53: #{_lambda_.1} parent=51 // pred_check
        %p1171 = pneg %p172
      $region54: #{_lambda_.1} parent=51 // pred_check_branch
        %1173 = sbr.rel (%p1171) target = $region56
      $region55: #{_lambda_.1} parent=51 // pred_region
        %s1174 = smul.u32 25, %s18
        %p1175 = scmp.lt.s32.totalorder %s1174, 49
        %s1176 = scalar_select %p1175, %s1174, 49
        %s1177 = smul.addr %s1176, 8
        %s1178 = scalar_lea.vmem %s6, %s1177
      $region56: #{_lambda_.1} parent=51 // pred_fallthru
        _
    $region52: #{_lambda_.1} parent=5 // pred_fallthru
      _
  $region6: #{_lambda_.1} parent=0 // loop_footer
    %s16 = sadd.s32 1, %s12
  $region7: #{_lambda_.1} parent=0 // loop_footer_branch
    %11 = sbr.rel target = $region3
  $region8: #{_lambda_.1} parent=0 // loop_exit
    _

</llo_original>
